<compile_context>
chip_gen: v6e
topology: v6e:2x2x1
jax: 0.10.0
libtpu: 0.0.40
codegen_flags: <defaults>
</compile_context>

<pallas_src>
import functools

import jax
import jax.numpy as jnp
from jax.experimental import pallas as pl
from jax.experimental.pallas import tpu as pltpu

NUM_GAUSSIANS = 64           # module default
CUTOFF = 10.0                # module default
NUM_EMB = 100                # Embedding(100, num_gaussians)
OUT_W = 2 * NUM_GAUSSIANS    # 128 output lanes
EMB_PAD = 128                # pad embedding rows to a lane-sized contraction dim
MAX_TILE_E = 512             # bandwidth-bound: bigger tiles buy nothing
TILE_ALIGN = 128
MIN_GRID_STEPS = 4           # >=2 steps per TensorCore on v7x when E permits


def _round_down(x, m):
    return (x // m) * m


def _choose_tile_e(E):
    """Bandwidth-bound kernel: pick the tile for grid-step count, not size.
    Target >= MIN_GRID_STEPS steps (real pipelining per v7x TensorCore), cap at
    MAX_TILE_E, keep tiles a multiple of 128 rows."""
    if E <= TILE_ALIGN * MIN_GRID_STEPS:
        return TILE_ALIGN
    tile = _round_down(E // MIN_GRID_STEPS, TILE_ALIGN)
    return max(TILE_ALIGN, min(MAX_TILE_E, tile))


def _edge_encoder_kernel(coeff, delta, packed_ref, emb_ref, out_ref):
    d = packed_ref[:, 0:1]                        # (tile_e, 1) f32 edge length
    t = packed_ref[:, 1:2].astype(jnp.int32)      # (tile_e, 1) i32 edge type

    # One shared lane iota: RBF offsets, RBF lane mask, one-hot comparison.
    col = jax.lax.broadcasted_iota(jnp.int32, (1, OUT_W), 1)        # (1, 128)

    # ---- Gaussian smearing: exp(coeff * (d - offset)^2) over all 128 lanes,
    # lane-masked to the first NUM_GAUSSIANS.  Offsets are
    # linspace(0, 2*cutoff, G) = delta * [0..G-1], synthesized on the VPU.
    off = delta * col.astype(jnp.float32)                           # (1, 128)
    diff = d - off                                                  # (tile_e, 128)
    rbf = jnp.exp(coeff * diff * diff)
    rbf = jnp.where(col < NUM_GAUSSIANS, rbf, 0.0)                  # zero lanes >= 64

    # ---- Embedding lookup as one-hot @ table (MXU).  The table is pre-padded
    # so the embedding lands in lanes 64..127 (zeros elsewhere), i.e. already
    # lane-aligned with the RBF half.  preferred_element_type pins f32 accum.
    onehot = jnp.where(col == t, 1.0, 0.0)                          # (tile_e, 128) f32
    emb = jnp.dot(onehot, emb_ref[...],
                  preferred_element_type=jnp.float32)               # (tile_e, 128)

    # Single lane-dense full-width (128-lane) store.
    out_ref[...] = (rbf + emb).astype(out_ref.dtype)


def gaussian_smearing_edge_encoder(edge_length, edge_type, emb_table,
                                   *, out_dtype=jnp.float32):
    """edge_length: (E, 1); edge_type: (E,) int (< 100); emb_table: (100, 64).
    Returns (E, 2*NUM_GAUSSIANS).  out_dtype=jnp.bfloat16 halves the output
    writeback (this kernel's only real cost) if the consumer tolerates it."""
    E = edge_length.shape[0]
    tile_e = _choose_tile_e(E)

    # Pack both per-edge scalars into one (E, 2) f32 array: one input DMA with
    # 8 B per row instead of two lane-padded 4 B strided DMAs.
    # edge_type < 100 is exactly representable in f32.
    packed = jnp.concatenate(
        [edge_length.reshape(E, 1).astype(jnp.float32),
         edge_type.reshape(E, 1).astype(jnp.float32)], axis=1)

    # Embedding table padded to (128, 128): rows 100..127 zero (edge_type < 100
    # per the module contract), weights in columns 64..127 so the matmul output
    # is already in its final lanes.
    emb_padded = jnp.zeros((EMB_PAD, OUT_W), jnp.float32)
    emb_padded = emb_padded.at[:NUM_EMB, NUM_GAUSSIANS:].set(
        emb_table.astype(jnp.float32))

    # Static RBF constants matching torch GaussianSmearing(start=0, stop=2*cutoff).
    delta = (2.0 * CUTOFF) / (NUM_GAUSSIANS - 1)
    coeff = -0.5 / (delta * delta)

    kernel = functools.partial(_edge_encoder_kernel, coeff, delta)

    return pl.pallas_call(
        kernel,
        out_shape=jax.ShapeDtypeStruct((E, OUT_W), out_dtype),
        grid_spec=pltpu.PrefetchScalarGridSpec(
            num_scalar_prefetch=0,
            grid=(pl.cdiv(E, tile_e),),                              # ragged E clipped
            in_specs=[
                pl.BlockSpec((tile_e, 2), lambda i: (i, 0)),         # packed inputs
                pl.BlockSpec((EMB_PAD, OUT_W), lambda i: (0, 0)),    # table (resident)
            ],
            out_specs=pl.BlockSpec((tile_e, OUT_W), lambda i: (i, 0)),
        ),
        compiler_params=pltpu.CompilerParams(
            dimension_semantics=("parallel",)),
    )(packed, emb_padded)


if __name__ == "__main__":
    key = jax.random.PRNGKey(0)
    k_len, k_type, k_emb = jax.random.split(key, 3)

    # Small, deliberately ragged edge count (not a multiple of 8/128).
    E = 300

    edge_length = jax.random.uniform(k_len, (E, 1), jnp.float32,
                                     minval=0.0, maxval=2.0 * CUTOFF)
    edge_type = jax.random.randint(k_type, (E,), 0, NUM_EMB, dtype=jnp.int32)

    # Deterministic Embedding(100, 64) weights (nn.Embedding default ~ N(0, 1)).
    emb_table = jax.random.normal(k_emb, (NUM_EMB, NUM_GAUSSIANS), jnp.float32)

    out = gaussian_smearing_edge_encoder(edge_length, edge_type, emb_table)
    out = jax.block_until_ready(out)

    # Pure-JAX reference check.
    offset = jnp.linspace(0.0, 2.0 * CUTOFF, NUM_GAUSSIANS, dtype=jnp.float32)
    delta = (2.0 * CUTOFF) / (NUM_GAUSSIANS - 1)
    coeff = -0.5 / (delta * delta)
    rbf_ref = jnp.exp(coeff * (edge_length - offset[None, :]) ** 2)
    emb_ref = emb_table[edge_type]
    ref = jnp.concatenate([rbf_ref, emb_ref], axis=1)

    assert out.shape == (E, 2 * NUM_GAUSSIANS)
    assert jnp.allclose(out, ref, atol=1e-5, rtol=1e-5)

    print("KERNEL_OK")
</pallas_src>

<mosaic_0001>
module attributes {stable_mosaic.version = 11 : i64} {
  func.func @_edge_encoder_kernel(%arg0: i32, %arg1: memref<128x2xf32, #tpu.memory_space<vmem>>, %arg2: memref<128x128xf32, #tpu.memory_space<vmem>>, %arg3: memref<128x128xf32, #tpu.memory_space<vmem>>) attributes {dimension_semantics = [#tpu.dimension_semantics<parallel>], iteration_bounds = array<i64: 3>, scalar_prefetch = 0 : i64, scratch_operands = 0 : i64, tpu.core_type = #tpu.core_type<tc>, window_params = [{transform_indices = @transform_0, window_bounds = array<i64: 128, 2>}, {pipeline_mode = #tpu.pipeline_mode<synchronous>, transform_indices = @transform_1, window_bounds = array<i64: 128, 128>}, {transform_indices = @transform_2, window_bounds = array<i64: 128, 128>}]} {
    %c0 = arith.constant 0 : index
    %c0_0 = arith.constant 0 : index
    %0 = vector.load %arg1[%c0, %c0_0] : memref<128x2xf32, #tpu.memory_space<vmem>>, vector<128x1xf32>
    %c0_1 = arith.constant 0 : index
    %c1 = arith.constant 1 : index
    %1 = vector.load %arg1[%c0_1, %c1] : memref<128x2xf32, #tpu.memory_space<vmem>>, vector<128x1xf32>
    %2 = arith.fptosi %1 : vector<128x1xf32> to vector<128x1xi32>
    %3 = tpu.iota {dimensions = array<i32: 1>} : vector<1x128xi32>
    %4 = arith.sitofp %3 : vector<1x128xi32> to vector<1x128xf32>
    %cst = arith.constant 0.317460328 : f32
    %5 = vector.broadcast %cst : f32 to vector<1x128xf32>
    %6 = arith.mulf %5, %4 : vector<1x128xf32>
    %7 = vector.broadcast %0 : vector<128x1xf32> to vector<128x128xf32>
    %8 = vector.broadcast %6 : vector<1x128xf32> to vector<128x128xf32>
    %9 = arith.subf %7, %8 : vector<128x128xf32>
    %cst_2 = arith.constant -4.961250e+00 : f32
    %10 = vector.broadcast %cst_2 : f32 to vector<128x128xf32>
    %11 = arith.mulf %10, %9 : vector<128x128xf32>
    %12 = arith.mulf %11, %9 : vector<128x128xf32>
    %13 = math.exp %12 : vector<128x128xf32>
    %c64_i32 = arith.constant 64 : i32
    %14 = vector.broadcast %c64_i32 : i32 to vector<1x128xi32>
    %15 = arith.cmpi slt, %3, %14 : vector<1x128xi32>
    %cst_3 = arith.constant 0.000000e+00 : f32
    %16 = vector.shape_cast %15 : vector<1x128xi1> to vector<1x128xi1>
    %17 = vector.broadcast %16 : vector<1x128xi1> to vector<128x128xi1>
    %18 = vector.broadcast %cst_3 : f32 to vector<128x128xf32>
    %19 = arith.select %17, %13, %18 : vector<128x128xi1>, vector<128x128xf32>
    %20 = vector.broadcast %3 : vector<1x128xi32> to vector<128x128xi32>
    %21 = vector.broadcast %2 : vector<128x1xi32> to vector<128x128xi32>
    %22 = arith.cmpi eq, %20, %21 : vector<128x128xi32>
    %cst_4 = arith.constant 1.000000e+00 : f32
    %cst_5 = arith.constant 0.000000e+00 : f32
    %23 = vector.broadcast %cst_4 : f32 to vector<128x128xf32>
    %24 = vector.broadcast %cst_5 : f32 to vector<128x128xf32>
    %25 = arith.select %22, %23, %24 : vector<128x128xi1>, vector<128x128xf32>
    %c0_6 = arith.constant 0 : index
    %c0_7 = arith.constant 0 : index
    %26 = vector.load %arg2[%c0_6, %c0_7] : memref<128x128xf32, #tpu.memory_space<vmem>>, vector<128x128xf32>
    %cst_8 = arith.constant dense<0.000000e+00> : vector<128x128xf32>
    %27 = tpu.matmul %25, %26, %cst_8 {dimension_numbers = #tpu.dot_dimension_numbers<[1], [0], [0], [1], [0, 0, 1, 1], [], []>} : vector<128x128xf32>, vector<128x128xf32>, vector<128x128xf32> -> vector<128x128xf32>
    %28 = arith.addf %19, %27 : vector<128x128xf32>
    %c0_9 = arith.constant 0 : index
    %c0_10 = arith.constant 0 : index
    %29 = vector.load %arg3[%c0_9, %c0_10] : memref<128x128xf32, #tpu.memory_space<vmem>>, vector<128x128xf32>
    tpu.vector_store %arg3[%c0_9, %c0_10], %28 {strides = array<i32>} : memref<128x128xf32, #tpu.memory_space<vmem>>, vector<128x128xf32>,
    return
  }
  func.func @transform_0(%arg0: i32) -> (i32, i32) {
    %c0_i32 = arith.constant 0 : i32
    %c0_i32_0 = arith.constant 0 : i32
    return %arg0, %c0_i32 : i32, i32
  }
  func.func @transform_1(%arg0: i32) -> (i32, i32) {
    %c0_i32 = arith.constant 0 : i32
    %c0_i32_0 = arith.constant 0 : i32
    %c0_i32_1 = arith.constant 0 : i32
    return %c0_i32, %c0_i32_0 : i32, i32
  }
  func.func @transform_2(%arg0: i32) -> (i32, i32) {
    %c0_i32 = arith.constant 0 : i32
    %c0_i32_0 = arith.constant 0 : i32
    return %arg0, %c0_i32 : i32, i32
  }
}

</mosaic_0001>

<llo_original>
// kernel: tpu_custom_call.1
$region0: #{tpu_custom_call.1}
  #allocation0 [shape = 'u32[]', space=smem, size = 0x4, offset = 0x4, fixed_abs, tag = 'smem constant byte address 0x4 - core index']
  #allocation1 [shape = 'u32[144,128]{1,0:T(1,128)}', space=vmem, size = 0x12000, scoped, tag = 'internal scratch']
  %s0 = inlined_call_operand.vmem [shape: f32[300,2], index: 0, kind: input, shape index: {}]
  %s1 = inlined_call_operand.vmem [shape: f32[128,128], index: 1, kind: input, shape index: {}]
  %s2 = inlined_call_operand.hbm [shape: f32[300,128], index: 2, kind: output, shape index: {}]
  %s3 = sld [smem:[#allocation0]]
  $region41: #{tpu_custom_call.1} parent=0
    _
  %s5 = ssub.s32 1, %s3
  %s6 = scalar_select 0, %s5, %s3
  $region1: #{tpu_custom_call.1} parent=0
    #allocation2 [shape = 'u8[131072]{0}', space=vmem, size = 0x20000, scoped, tag = 'output window, operand 0']
    #allocation3 [shape = 's32[2]{0}', space=sflag, size = 0x8, scoped, tag = 'scoped memory for tpu_custom_call.1']
    %7 = vsyncpa [#allocation3], 0
    %s8 = scalar_lea.sflag [#allocation3], 1
    %9 = vsyncpa %s8, 0
    loop: start=0, step=1, limit=5
    $region2: #{tpu_custom_call.1} parent=1 // loop_pre_header
      _
    $region3: #{tpu_custom_call.1} parent=1 // loop_header
      %s11 = sphi 0, %s15
      %p12 = scmp.ge.s32.totalorder %s11, 5
      %s21 = sphi 0, %s23
      %s24 = sphi 0, %s21
      %s25 = sphi 0, %s24
      %s41 = sphi 0, %s25
      %s45 = sphi 0, %s45
      %s47 = sphi 0, %s45
      %s48 = sphi 0, %s47
      %s62 = sphi 0, %s48
      %s68 = sphi 0, %s70
      %s71 = sphi 0, %s68
      %s72 = sphi 0, %s71
      %s88 = sphi 0, %s72
    $region4: #{tpu_custom_call.1} parent=1 // loop_header_branch
      %14 = sbr.rel (%p12) target = $region8
    $region5: #{tpu_custom_call.1} parent=1 // loop_body
      %s16 = ssub.s32 %s11, 1
      %s17 = ssub.s32 %s11, 2
      %s18 = sadd.s32 %s11, 1
      %s19 = ssub.s32 %s11, %s18
      %p20 = scmp.eq.s32.totalorder %s19, 0
      %s22 = sadd.s32 %s21, 1
      %s23 = scalar_select %p20, %s21, %s22
      %p26 = pneg %p20
      %p27 = scmp.eq.s32.totalorder %s11, 2
      %p28 = por %p26, %p27
      %p29 = scmp.ne.s32.totalorder %s21, %s24
      %p30 = scmp.eq.s32.totalorder %s11, 0
      %p31 = por %p29, %p30
      %p32 = scmp.ne.s32.totalorder %s21, %s24
      %p33 = scmp.eq.s32.totalorder %s16, 2
      %p34 = por %p32, %p33
      %p35 = scmp.ne.s32.totalorder %s24, %s25
      %p36 = scmp.eq.s32.totalorder %s16, 0
      %p37 = por %p35, %p36
      %p38 = scmp.ne.s32.totalorder %s24, %s25
      %p39 = scmp.eq.s32.totalorder %s17, 2
      %p40 = por %p38, %p39
      %p42 = scmp.ne.s32.totalorder %s25, %s41
      %p43 = scmp.eq.s32.totalorder %s17, 0
      %p44 = por %p42, %p43
      %s46 = sadd.s32 %s45, 1
      %p49 = scmp.eq.s32.totalorder %s11, 2
      %p50 = scmp.ne.s32.totalorder %s45, %s47
      %p51 = scmp.eq.s32.totalorder %s11, 0
      %p52 = por %p50, %p51
      %p53 = scmp.ne.s32.totalorder %s45, %s47
      %p54 = scmp.eq.s32.totalorder %s16, 2
      %p55 = por %p53, %p54
      %p56 = scmp.ne.s32.totalorder %s47, %s48
      %p57 = scmp.eq.s32.totalorder %s16, 0
      %p58 = por %p56, %p57
      %p59 = scmp.ne.s32.totalorder %s47, %s48
      %p60 = scmp.eq.s32.totalorder %s17, 2
      %p61 = por %p59, %p60
      %p63 = scmp.ne.s32.totalorder %s48, %s62
      %p64 = scmp.eq.s32.totalorder %s17, 0
      %p65 = por %p63, %p64
      %s66 = ssub.s32 %s11, %s18
      %p67 = scmp.eq.s32.totalorder %s66, 0
      %s69 = sadd.s32 %s68, 1
      %s70 = scalar_select %p67, %s68, %s69
      %p73 = pneg %p67
      %p74 = scmp.eq.s32.totalorder %s11, 2
      %p75 = por %p73, %p74
      %p76 = scmp.ne.s32.totalorder %s68, %s71
      %p77 = scmp.eq.s32.totalorder %s11, 0
      %p78 = por %p76, %p77
      %p79 = scmp.ne.s32.totalorder %s68, %s71
      %p80 = scmp.eq.s32.totalorder %s16, 2
      %p81 = por %p79, %p80
      %p82 = scmp.ne.s32.totalorder %s71, %s72
      %p83 = scmp.eq.s32.totalorder %s16, 0
      %p84 = por %p82, %p83
      %p85 = scmp.ne.s32.totalorder %s71, %s72
      %p86 = scmp.eq.s32.totalorder %s17, 2
      %p87 = por %p85, %p86
      %p89 = scmp.ne.s32.totalorder %s72, %s88
      %p90 = scmp.eq.s32.totalorder %s17, 0
      %p91 = por %p89, %p90
      %p92 = scmp.le.s32.totalorder 1, %s11
      %p93 = scmp.lt.s32.totalorder %s11, 4
      %p94 = pnand %p92, %p93
      %p95 = pneg %p94
      // Predicated region
      $region9: #{tpu_custom_call.1} parent=5 // pred_check
        _
      $region10: #{tpu_custom_call.1} parent=5 // pred_check_branch
        %97 = sbr.rel (%p94) target = $region12
      $region11: #{tpu_custom_call.1} parent=5 // pred_region
        %s98 = ssub.s32 %s11, 1
        // Predicated region
        $region13: #{tpu_custom_call.1} parent=11 // pred_check
          %p99 = pneg %p58
        $region14: #{tpu_custom_call.1} parent=11 // pred_check_branch
          %101 = sbr.rel (%p99) target = $region16
        $region15: #{tpu_custom_call.1} parent=11 // pred_region
          _
        $region16: #{tpu_custom_call.1} parent=11 // pred_fallthru
          _
      $region12: #{tpu_custom_call.1} parent=5 // pred_fallthru
        _
      %p102 = scmp.lt.s32.totalorder %s11, 3
      // Predicated region
      $region17: #{tpu_custom_call.1} parent=5 // pred_check
        %p103 = pneg %p102
      $region18: #{tpu_custom_call.1} parent=5 // pred_check_branch
        %105 = sbr.rel (%p103) target = $region20
      $region19: #{tpu_custom_call.1} parent=5 // pred_region
        // Predicated region
        $region21: #{tpu_custom_call.1} parent=19 // pred_check
          %p106 = pneg %p31
        $region22: #{tpu_custom_call.1} parent=19 // pred_check_branch
          %108 = sbr.rel (%p106) target = $region24
        $region23: #{tpu_custom_call.1} parent=19 // pred_region
          %s109 = smul.u32 16, %s11
          %s110 = ssub.s32 38, %s109
          %p111 = scmp.lt.s32.totalorder %s110, 16
          %s112 = scalar_select %p111, %s110, 16
          %s113 = smul.u32 128, %s112
          %p114 = scmp.lt.s32.totalorder %s109, 37
          %s115 = scalar_select %p114, %s109, 37
          %s116 = smul.addr %s115, 8
          %s117 = scalar_lea.vmem %s0, %s116
          %s118 = smul.u32 16, %s11
          %s119 = ssub.s32 38, %s118
          %p120 = scmp.lt.s32.totalorder %s119, 16
          %s121 = scalar_select %p120, %s119, 16
          %s122 = smul.u32 128, %s121
        $region24: #{tpu_custom_call.1} parent=19 // pred_fallthru
          _
      $region20: #{tpu_custom_call.1} parent=5 // pred_fallthru
        _
      %p123 = scmp.le.s32.totalorder 1, %s11
      %p124 = scmp.lt.s32.totalorder %s11, 4
      %p125 = pnand %p123, %p124
      %p126 = pneg %p125
      // Predicated region
      $region25: #{tpu_custom_call.1} parent=5 // pred_check
        _
      $region26: #{tpu_custom_call.1} parent=5 // pred_check_branch
        %128 = sbr.rel (%p125) target = $region28
      $region27: #{tpu_custom_call.1} parent=5 // pred_region
        %s129 = ssub.s32 %s11, 1
        %s130 = smul.u32 16, %s16
        %s131 = ssub.s32 38, %s130
        %p132 = scmp.lt.s32.totalorder %s131, 16
        %s133 = scalar_select %p132, %s131, 16
        %s134 = smul.u32 128, %s133
        %p135 = scmp.lt.s32.totalorder %s130, 37
        %s136 = scalar_select %p135, %s130, 37
        %s137 = smul.addr %s136, 8
        %s138 = scalar_lea.vmem %s0, %s137
        %p139 = pneg %p37
        %p140 = pneg %p34
        %p141 = pneg %p58
        %p142 = pneg %p55
        %p143 = pneg %p84
        %p144 = pneg %p81
        %s145 = sand.u32 %s71, 1
        %s146 = scalar_lea.sflag [#allocation3], %s145
        %s147 = sand.u32 %s71, 1
        %s148 = smul.addr %s147, 128
        %s149 = scalar_lea.vmem [#allocation2], %s148
        %s150 = smul.u32 16, %s16
        %s151 = ssub.s32 38, %s150
        %p152 = scmp.lt.s32.totalorder %s151, 16
        %s153 = scalar_select %p152, %s151, 16
        %s154 = smul.u32 128, %s153
        %p155 = scmp.lt.s32.totalorder %s150, 37
        %s156 = scalar_select %p155, %s150, 37
        %s157 = smul.addr %s156, 8
        %s158 = scalar_lea.vmem %s0, %s157
        %s159 = smul.u32 16, %s16
        %s160 = ssub.s32 38, %s159
        %p161 = scmp.lt.s32.totalorder %s160, 16
        %s162 = scalar_select %p161, %s160, 16
        %s163 = smul.u32 128, %s162
        %s164 = smul.u32 16, %s16
        %s165 = ssub.s32 38, %s164
        %p166 = scmp.lt.s32.totalorder %s165, 16
        %s167 = scalar_select %p166, %s165, 16
        %s168 = smul.u32 128, %s167
        %v169 = vld [vmem:[%s158] sm:$0xff]
        %v170 = vld [vmem:[%s158 + $0x8] sm:$0xff]
        %v171 = vld [vmem:[%s158 + $0x10] sm:$0xff]
        %v172 = vld [vmem:[%s158 + $0x18] sm:$0xff]
        %v173 = vld [vmem:[%s158 + $0x20] sm:$0xff]
        %v174 = vld [vmem:[%s158 + $0x28] sm:$0xff]
        %v175 = vld [vmem:[%s158 + $0x30] sm:$0xff]
        %v176 = vld [vmem:[%s158 + $0x38] sm:$0xff]
        %v177 = vld [vmem:[%s158 + $0x40] sm:$0xff]
        %v178 = vld [vmem:[%s158 + $0x48] sm:$0xff]
        %v179 = vld [vmem:[%s158 + $0x50] sm:$0xff]
        %v180 = vld [vmem:[%s158 + $0x58] sm:$0xff]
        %v181 = vld [vmem:[%s158 + $0x60] sm:$0xff]
        %v182 = vld [vmem:[%s158 + $0x68] sm:$0xff]
        %v183 = vld [vmem:[%s158 + $0x70] sm:$0xff]
        %v184 = vld [vmem:[%s158 + $0x78] sm:$0xff]
        %v185 = vcvt.f32.s32.to.zero.pseudo %v169
        %v186 = vcvt.f32.s32.to.zero.pseudo %v170
        %v187 = vcvt.f32.s32.to.zero.pseudo %v171
        %v188 = vcvt.f32.s32.to.zero.pseudo %v172
        %v189 = vcvt.f32.s32.to.zero.pseudo %v173
        %v190 = vcvt.f32.s32.to.zero.pseudo %v174
        %v191 = vcvt.f32.s32.to.zero.pseudo %v175
        %v192 = vcvt.f32.s32.to.zero.pseudo %v176
        %v193 = vcvt.f32.s32.to.zero.pseudo %v177
        %v194 = vcvt.f32.s32.to.zero.pseudo %v178
        %v195 = vcvt.f32.s32.to.zero.pseudo %v179
        %v196 = vcvt.f32.s32.to.zero.pseudo %v180
        %v197 = vcvt.f32.s32.to.zero.pseudo %v181
        %v198 = vcvt.f32.s32.to.zero.pseudo %v182
        %v199 = vcvt.f32.s32.to.zero.pseudo %v183
        %v200 = vcvt.f32.s32.to.zero.pseudo %v184
        %v201 = vlaneseq
        %v202 = vand.u32 %v201, 127
        %v203 = vcvt.s32.f32 %v202
        %v204 = vmul.f32 %v203, 0.31746033
        %206 = vset.pattern.permute.xlu0 0
        %207 = vperm.xlu0 %206, %v169
        %v208 = vpop.permute.xlu0 %207
        %211 = vset.pattern.permute.xlu0 0
        %212 = vperm.xlu0 %211, %v170
        %v213 = vpop.permute.xlu0 %212
        %216 = vset.pattern.permute.xlu0 0
        %217 = vperm.xlu0 %216, %v171
        %v218 = vpop.permute.xlu0 %217
        %221 = vset.pattern.permute.xlu0 0
        %222 = vperm.xlu0 %221, %v172
        %v223 = vpop.permute.xlu0 %222
        %226 = vset.pattern.permute.xlu0 0
        %227 = vperm.xlu0 %226, %v173
        %v228 = vpop.permute.xlu0 %227
        %231 = vset.pattern.permute.xlu0 0
        %232 = vperm.xlu0 %231, %v174
        %v233 = vpop.permute.xlu0 %232
        %236 = vset.pattern.permute.xlu0 0
        %237 = vperm.xlu0 %236, %v175
        %v238 = vpop.permute.xlu0 %237
        %241 = vset.pattern.permute.xlu0 0
        %242 = vperm.xlu0 %241, %v176
        %v243 = vpop.permute.xlu0 %242
        %246 = vset.pattern.permute.xlu0 0
        %247 = vperm.xlu0 %246, %v177
        %v248 = vpop.permute.xlu0 %247
        %251 = vset.pattern.permute.xlu0 0
        %252 = vperm.xlu0 %251, %v178
        %v253 = vpop.permute.xlu0 %252
        %256 = vset.pattern.permute.xlu0 0
        %257 = vperm.xlu0 %256, %v179
        %v258 = vpop.permute.xlu0 %257
        %261 = vset.pattern.permute.xlu0 0
        %262 = vperm.xlu0 %261, %v180
        %v263 = vpop.permute.xlu0 %262
        %266 = vset.pattern.permute.xlu0 0
        %267 = vperm.xlu0 %266, %v181
        %v268 = vpop.permute.xlu0 %267
        %271 = vset.pattern.permute.xlu0 0
        %272 = vperm.xlu0 %271, %v182
        %v273 = vpop.permute.xlu0 %272
        %276 = vset.pattern.permute.xlu0 0
        %277 = vperm.xlu0 %276, %v183
        %v278 = vpop.permute.xlu0 %277
        %281 = vset.pattern.permute.xlu0 0
        %282 = vperm.xlu0 %281, %v184
        %v283 = vpop.permute.xlu0 %282
        %v285 = vsub.f32 %v208, %v204
        %v286 = vsub.f32 %v213, %v204
        %v287 = vsub.f32 %v218, %v204
        %v288 = vsub.f32 %v223, %v204
        %v289 = vsub.f32 %v228, %v204
        %v290 = vsub.f32 %v233, %v204
        %v291 = vsub.f32 %v238, %v204
        %v292 = vsub.f32 %v243, %v204
        %v293 = vsub.f32 %v248, %v204
        %v294 = vsub.f32 %v253, %v204
        %v295 = vsub.f32 %v258, %v204
        %v296 = vsub.f32 %v263, %v204
        %v297 = vsub.f32 %v268, %v204
        %v298 = vsub.f32 %v273, %v204
        %v299 = vsub.f32 %v278, %v204
        %v300 = vsub.f32 %v283, %v204
        %v301 = vmul.f32 %v285, -4.96125
        %v302 = vmul.f32 %v286, -4.96125
        %v303 = vmul.f32 %v287, -4.96125
        %v304 = vmul.f32 %v288, -4.96125
        %v305 = vmul.f32 %v289, -4.96125
        %v306 = vmul.f32 %v290, -4.96125
        %v307 = vmul.f32 %v291, -4.96125
        %v308 = vmul.f32 %v292, -4.96125
        %v309 = vmul.f32 %v293, -4.96125
        %v310 = vmul.f32 %v294, -4.96125
        %v311 = vmul.f32 %v295, -4.96125
        %v312 = vmul.f32 %v296, -4.96125
        %v313 = vmul.f32 %v297, -4.96125
        %v314 = vmul.f32 %v298, -4.96125
        %v315 = vmul.f32 %v299, -4.96125
        %v316 = vmul.f32 %v300, -4.96125
        %v317 = vmul.f32 %v301, %v285
        %v318 = vmul.f32 %v302, %v286
        %v319 = vmul.f32 %v303, %v287
        %v320 = vmul.f32 %v304, %v288
        %v321 = vmul.f32 %v305, %v289
        %v322 = vmul.f32 %v306, %v290
        %v323 = vmul.f32 %v307, %v291
        %v324 = vmul.f32 %v308, %v292
        %v325 = vmul.f32 %v309, %v293
        %v326 = vmul.f32 %v310, %v294
        %v327 = vmul.f32 %v311, %v295
        %v328 = vmul.f32 %v312, %v296
        %v329 = vmul.f32 %v313, %v297
        %v330 = vmul.f32 %v314, %v298
        %v331 = vmul.f32 %v315, %v299
        %v332 = vmul.f32 %v316, %v300
        %v333 = vmul.f32 %v317, 1.442695
        %v334 = vpow.pop %v333
        %v335 = vmul.f32 %v318, 1.442695
        %v336 = vpow.pop %v335
        %v337 = vmul.f32 %v319, 1.442695
        %v338 = vpow.pop %v337
        %v339 = vmul.f32 %v320, 1.442695
        %v340 = vpow.pop %v339
        %v341 = vmul.f32 %v321, 1.442695
        %v342 = vpow.pop %v341
        %v343 = vmul.f32 %v322, 1.442695
        %v344 = vpow.pop %v343
        %v345 = vmul.f32 %v323, 1.442695
        %v346 = vpow.pop %v345
        %v347 = vmul.f32 %v324, 1.442695
        %v348 = vpow.pop %v347
        %v349 = vmul.f32 %v325, 1.442695
        %v350 = vpow.pop %v349
        %v351 = vmul.f32 %v326, 1.442695
        %v352 = vpow.pop %v351
        %v353 = vmul.f32 %v327, 1.442695
        %v354 = vpow.pop %v353
        %v355 = vmul.f32 %v328, 1.442695
        %v356 = vpow.pop %v355
        %v357 = vmul.f32 %v329, 1.442695
        %v358 = vpow.pop %v357
        %v359 = vmul.f32 %v330, 1.442695
        %v360 = vpow.pop %v359
        %v361 = vmul.f32 %v331, 1.442695
        %v362 = vpow.pop %v361
        %v363 = vmul.f32 %v332, 1.442695
        %v364 = vpow.pop %v363
        %vm365 = vcmp.lt.s32.totalorder %v202, 64
        %v366 = vsel %vm365, 1, 0
        %vm367 = vcmp.eq.s32.totalorder %v366, 1
        %v368 = vsel %vm367, %v334, 0.0
        %v369 = vsel %vm367, %v336, 0.0
        %v370 = vsel %vm367, %v338, 0.0
        %v371 = vsel %vm367, %v340, 0.0
        %v372 = vsel %vm367, %v342, 0.0
        %v373 = vsel %vm367, %v344, 0.0
        %v374 = vsel %vm367, %v346, 0.0
        %v375 = vsel %vm367, %v348, 0.0
        %v376 = vsel %vm367, %v350, 0.0
        %v377 = vsel %vm367, %v352, 0.0
        %v378 = vsel %vm367, %v354, 0.0
        %v379 = vsel %vm367, %v356, 0.0
        %v380 = vsel %vm367, %v358, 0.0
        %v381 = vsel %vm367, %v360, 0.0
        %v382 = vsel %vm367, %v362, 0.0
        %v383 = vsel %vm367, %v364, 0.0
        %384 = vset.pattern.permute.xlu0 1
        %385 = vperm.xlu0 %384, %v185
        %v386 = vpop.permute.xlu0 %385
        %387 = vset.pattern.permute.xlu0 1
        %388 = vperm.xlu0 %387, %v186
        %v389 = vpop.permute.xlu0 %388
        %390 = vset.pattern.permute.xlu0 1
        %391 = vperm.xlu0 %390, %v187
        %v392 = vpop.permute.xlu0 %391
        %393 = vset.pattern.permute.xlu0 1
        %394 = vperm.xlu0 %393, %v188
        %v395 = vpop.permute.xlu0 %394
        %396 = vset.pattern.permute.xlu0 1
        %397 = vperm.xlu0 %396, %v189
        %v398 = vpop.permute.xlu0 %397
        %399 = vset.pattern.permute.xlu0 1
        %400 = vperm.xlu0 %399, %v190
        %v401 = vpop.permute.xlu0 %400
        %402 = vset.pattern.permute.xlu0 1
        %403 = vperm.xlu0 %402, %v191
        %v404 = vpop.permute.xlu0 %403
        %405 = vset.pattern.permute.xlu0 1
        %406 = vperm.xlu0 %405, %v192
        %v407 = vpop.permute.xlu0 %406
        %408 = vset.pattern.permute.xlu0 1
        %409 = vperm.xlu0 %408, %v193
        %v410 = vpop.permute.xlu0 %409
        %411 = vset.pattern.permute.xlu0 1
        %412 = vperm.xlu0 %411, %v194
        %v413 = vpop.permute.xlu0 %412
        %414 = vset.pattern.permute.xlu0 1
        %415 = vperm.xlu0 %414, %v195
        %v416 = vpop.permute.xlu0 %415
        %417 = vset.pattern.permute.xlu0 1
        %418 = vperm.xlu0 %417, %v196
        %v419 = vpop.permute.xlu0 %418
        %420 = vset.pattern.permute.xlu0 1
        %421 = vperm.xlu0 %420, %v197
        %v422 = vpop.permute.xlu0 %421
        %423 = vset.pattern.permute.xlu0 1
        %424 = vperm.xlu0 %423, %v198
        %v425 = vpop.permute.xlu0 %424
        %426 = vset.pattern.permute.xlu0 1
        %427 = vperm.xlu0 %426, %v199
        %v428 = vpop.permute.xlu0 %427
        %429 = vset.pattern.permute.xlu0 1
        %430 = vperm.xlu0 %429, %v200
        %v431 = vpop.permute.xlu0 %430
        %vm432 = vcmp.eq.s32.totalorder %v202, %v386
        %vm433 = vcmp.eq.s32.totalorder %v202, %v389
        %vm434 = vcmp.eq.s32.totalorder %v202, %v392
        %vm435 = vcmp.eq.s32.totalorder %v202, %v395
        %vm436 = vcmp.eq.s32.totalorder %v202, %v398
        %vm437 = vcmp.eq.s32.totalorder %v202, %v401
        %vm438 = vcmp.eq.s32.totalorder %v202, %v404
        %vm439 = vcmp.eq.s32.totalorder %v202, %v407
        %vm440 = vcmp.eq.s32.totalorder %v202, %v410
        %vm441 = vcmp.eq.s32.totalorder %v202, %v413
        %vm442 = vcmp.eq.s32.totalorder %v202, %v416
        %vm443 = vcmp.eq.s32.totalorder %v202, %v419
        %vm444 = vcmp.eq.s32.totalorder %v202, %v422
        %vm445 = vcmp.eq.s32.totalorder %v202, %v425
        %vm446 = vcmp.eq.s32.totalorder %v202, %v428
        %vm447 = vcmp.eq.s32.totalorder %v202, %v431
        %v448 = vsel %vm432, 1.0, 0.0
        %v449 = vsel %vm433, 1.0, 0.0
        %v450 = vsel %vm434, 1.0, 0.0
        %v451 = vsel %vm435, 1.0, 0.0
        %v452 = vsel %vm436, 1.0, 0.0
        %v453 = vsel %vm437, 1.0, 0.0
        %v454 = vsel %vm438, 1.0, 0.0
        %v455 = vsel %vm439, 1.0, 0.0
        %v456 = vsel %vm440, 1.0, 0.0
        %v457 = vsel %vm441, 1.0, 0.0
        %v458 = vsel %vm442, 1.0, 0.0
        %v459 = vsel %vm443, 1.0, 0.0
        %v460 = vsel %vm444, 1.0, 0.0
        %v461 = vsel %vm445, 1.0, 0.0
        %v462 = vsel %vm446, 1.0, 0.0
        %v463 = vsel %vm447, 1.0, 0.0
        %v464 = vld [vmem:[%s1] sm:$0xff]
        %v465 = vld [vmem:[%s1 + $0x8] sm:$0xff]
        %v466 = vld [vmem:[%s1 + $0x10] sm:$0xff]
        %v467 = vld [vmem:[%s1 + $0x18] sm:$0xff]
        %v468 = vld [vmem:[%s1 + $0x20] sm:$0xff]
        %v469 = vld [vmem:[%s1 + $0x28] sm:$0xff]
        %v470 = vld [vmem:[%s1 + $0x30] sm:$0xff]
        %v471 = vld [vmem:[%s1 + $0x38] sm:$0xff]
        %v472 = vld [vmem:[%s1 + $0x40] sm:$0xff]
        %v473 = vld [vmem:[%s1 + $0x48] sm:$0xff]
        %v474 = vld [vmem:[%s1 + $0x50] sm:$0xff]
        %v475 = vld [vmem:[%s1 + $0x58] sm:$0xff]
        %v476 = vld [vmem:[%s1 + $0x60] sm:$0xff]
        %v477 = vld [vmem:[%s1 + $0x68] sm:$0xff]
        %v478 = vld [vmem:[%s1 + $0x70] sm:$0xff]
        %v479 = vld [vmem:[%s1 + $0x78] sm:$0xff]
        %480 = vmatprep.subr.mxu0 0.0
        %481 = vmatpush1.msra.mxu0 %v479
        %482 = vmatprep.subr.mxu0 0.0
        %483 = vmatpush1.msra.mxu0 %v478
        %484 = vmatprep.subr.mxu0 0.0
        %485 = vmatpush1.msra.mxu0 %v477
        %486 = vmatprep.subr.mxu0 0.0
        %487 = vmatpush1.msra.mxu0 %v476
        %488 = vmatprep.subr.mxu0 0.0
        %489 = vmatpush1.msra.mxu0 %v475
        %490 = vmatprep.subr.mxu0 0.0
        %491 = vmatpush1.msra.mxu0 %v474
        %492 = vmatprep.subr.mxu0 0.0
        %493 = vmatpush1.msra.mxu0 %v473
        %494 = vmatprep.subr.mxu0 0.0
        %495 = vmatpush1.msra.mxu0 %v472
        %496 = vmatprep.subr.mxu0 0.0
        %497 = vmatpush1.msra.mxu0 %v471
        %498 = vmatprep.subr.mxu0 0.0
        %499 = vmatpush1.msra.mxu0 %v470
        %500 = vmatprep.subr.mxu0 0.0
        %501 = vmatpush1.msra.mxu0 %v469
        %502 = vmatprep.subr.mxu0 0.0
        %503 = vmatpush1.msra.mxu0 %v468
        %504 = vmatprep.subr.mxu0 0.0
        %505 = vmatpush1.msra.mxu0 %v467
        %506 = vmatprep.subr.mxu0 0.0
        %507 = vmatpush1.msra.mxu0 %v466
        %508 = vmatprep.subr.mxu0 0.0
        %509 = vmatpush1.msra.mxu0 %v465
        %510 = vmatprep.subr.mxu0 0.0
        %511 = vmatpush1.msra.mxu0 %v464
        %512 = vmatprep.subr.mxu0 0.0
        %513 = vmatpush2.msra.mxu0 0.0
        %514 = vmatprep.subr.mxu0 0.0
        %515 = vmatpush2.msra.mxu0 0.0
        %516 = vmatprep.subr.mxu0 0.0
        %517 = vmatpush2.msra.mxu0 0.0
        %518 = vmatprep.subr.mxu0 0.0
        %519 = vmatpush2.msra.mxu0 0.0
        %520 = vmatprep.subr.mxu0 0.0
        %521 = vmatpush2.msra.mxu0 0.0
        %522 = vmatprep.subr.mxu0 0.0
        %523 = vmatpush2.msra.mxu0 0.0
        %524 = vmatprep.subr.mxu0 0.0
        %525 = vmatpush2.msra.mxu0 0.0
        %526 = vmatprep.subr.mxu0 0.0
        %527 = vmatpush2.msra.mxu0 0.0
        %528 = vmatprep.subr.mxu0 0.0
        %529 = vmatpush2.msra.mxu0 0.0
        %530 = vmatprep.subr.mxu0 0.0
        %531 = vmatpush2.msra.mxu0 0.0
        %532 = vmatprep.subr.mxu0 0.0
        %533 = vmatpush2.msra.mxu0 0.0
        %534 = vmatprep.subr.mxu0 0.0
        %535 = vmatpush2.msra.mxu0 0.0
        %536 = vmatprep.subr.mxu0 0.0
        %537 = vmatpush2.msra.mxu0 0.0
        %538 = vmatprep.subr.mxu0 0.0
        %539 = vmatpush2.msra.mxu0 0.0
        %540 = vmatprep.subr.mxu0 0.0
        %541 = vmatpush2.msra.mxu0 0.0
        %542 = vmatprep.subr.mxu0 0.0
        %543 = vmatpush2.msra.mxu0 0.0
        %544 = vmatprep.mubr.f32.mxu0 0.0
        %545 = vmatmul.mubr.f32.gmra.mxu0 %v448
        %v546 = vpop.f32.mrf.mxu0
        %v547 = vadd.f32 0.0, %v546
        %v548 = vpop.f32.mrf.mxu0
        %549 = vmatprep.mubr.f32.mxu0 0.0
        %550 = vmatmul.mubr.f32.gmra.mxu0 %v449
        %v551 = vpop.f32.mrf.mxu0
        %v552 = vadd.f32 0.0, %v551
        %v553 = vpop.f32.mrf.mxu0
        %554 = vmatprep.mubr.f32.mxu0 0.0
        %555 = vmatmul.mubr.f32.gmra.mxu0 %v450
        %v556 = vpop.f32.mrf.mxu0
        %v557 = vadd.f32 0.0, %v556
        %v558 = vpop.f32.mrf.mxu0
        %559 = vmatprep.mubr.f32.mxu0 0.0
        %560 = vmatmul.mubr.f32.gmra.mxu0 %v451
        %v561 = vpop.f32.mrf.mxu0
        %v562 = vadd.f32 0.0, %v561
        %v563 = vpop.f32.mrf.mxu0
        %564 = vmatprep.mubr.f32.mxu0 0.0
        %565 = vmatmul.mubr.f32.gmra.mxu0 %v452
        %v566 = vpop.f32.mrf.mxu0
        %v567 = vadd.f32 0.0, %v566
        %v568 = vpop.f32.mrf.mxu0
        %569 = vmatprep.mubr.f32.mxu0 0.0
        %570 = vmatmul.mubr.f32.gmra.mxu0 %v453
        %v571 = vpop.f32.mrf.mxu0
        %v572 = vadd.f32 0.0, %v571
        %v573 = vpop.f32.mrf.mxu0
        %574 = vmatprep.mubr.f32.mxu0 0.0
        %575 = vmatmul.mubr.f32.gmra.mxu0 %v454
        %v576 = vpop.f32.mrf.mxu0
        %v577 = vadd.f32 0.0, %v576
        %v578 = vpop.f32.mrf.mxu0
        %579 = vmatprep.mubr.f32.mxu0 0.0
        %580 = vmatmul.mubr.f32.gmra.mxu0 %v455
        %v581 = vpop.f32.mrf.mxu0
        %v582 = vadd.f32 0.0, %v581
        %v583 = vpop.f32.mrf.mxu0
        %584 = vmatprep.mubr.f32.mxu0 0.0
        %585 = vmatmul.mubr.f32.gmra.mxu0 %v456
        %v586 = vpop.f32.mrf.mxu0
        %v587 = vadd.f32 0.0, %v586
        %v588 = vpop.f32.mrf.mxu0
        %589 = vmatprep.mubr.f32.mxu0 0.0
        %590 = vmatmul.mubr.f32.gmra.mxu0 %v457
        %v591 = vpop.f32.mrf.mxu0
        %v592 = vadd.f32 0.0, %v591
        %v593 = vpop.f32.mrf.mxu0
        %594 = vmatprep.mubr.f32.mxu0 0.0
        %595 = vmatmul.mubr.f32.gmra.mxu0 %v458
        %v596 = vpop.f32.mrf.mxu0
        %v597 = vadd.f32 0.0, %v596
        %v598 = vpop.f32.mrf.mxu0
        %599 = vmatprep.mubr.f32.mxu0 0.0
        %600 = vmatmul.mubr.f32.gmra.mxu0 %v459
        %v601 = vpop.f32.mrf.mxu0
        %v602 = vadd.f32 0.0, %v601
        %v603 = vpop.f32.mrf.mxu0
        %604 = vmatprep.mubr.f32.mxu0 0.0
        %605 = vmatmul.mubr.f32.gmra.mxu0 %v460
        %v606 = vpop.f32.mrf.mxu0
        %v607 = vadd.f32 0.0, %v606
        %v608 = vpop.f32.mrf.mxu0
        %609 = vmatprep.mubr.f32.mxu0 0.0
        %610 = vmatmul.mubr.f32.gmra.mxu0 %v461
        %v611 = vpop.f32.mrf.mxu0
        %v612 = vadd.f32 0.0, %v611
        %v613 = vpop.f32.mrf.mxu0
        %614 = vmatprep.mubr.f32.mxu0 0.0
        %615 = vmatmul.mubr.f32.gmra.mxu0 %v462
        %v616 = vpop.f32.mrf.mxu0
        %v617 = vadd.f32 0.0, %v616
        %v618 = vpop.f32.mrf.mxu0
        %619 = vmatprep.mubr.f32.mxu0 0.0
        %620 = vmatmul.mubr.f32.gmra.mxu0 %v463
        %v621 = vpop.f32.mrf.mxu0
        %v622 = vadd.f32 0.0, %v621
        %v623 = vpop.f32.mrf.mxu0
        %624 = vdwg.mxu0
        %v625 = vadd.f32 %v368, %v547
        %v626 = vadd.f32 %v369, %v552
        %v627 = vadd.f32 %v370, %v557
        %v628 = vadd.f32 %v371, %v562
        %v629 = vadd.f32 %v372, %v567
        %v630 = vadd.f32 %v373, %v572
        %v631 = vadd.f32 %v374, %v577
        %v632 = vadd.f32 %v375, %v582
        %v633 = vadd.f32 %v376, %v587
        %v634 = vadd.f32 %v377, %v592
        %v635 = vadd.f32 %v378, %v597
        %v636 = vadd.f32 %v379, %v602
        %v637 = vadd.f32 %v380, %v607
        %v638 = vadd.f32 %v381, %v612
        %v639 = vadd.f32 %v382, %v617
        %v640 = vadd.f32 %v383, %v622
        %641 = vst [vmem:[%s149] sm:$0xff] %v625
        %642 = vst [vmem:[%s149 + $0x8] sm:$0xff] %v626
        %643 = vst [vmem:[%s149 + $0x10] sm:$0xff] %v627
        %644 = vst [vmem:[%s149 + $0x18] sm:$0xff] %v628
        %645 = vst [vmem:[%s149 + $0x20] sm:$0xff] %v629
        %646 = vst [vmem:[%s149 + $0x28] sm:$0xff] %v630
        %647 = vst [vmem:[%s149 + $0x30] sm:$0xff] %v631
        %648 = vst [vmem:[%s149 + $0x38] sm:$0xff] %v632
        %649 = vst [vmem:[%s149 + $0x40] sm:$0xff] %v633
        %650 = vst [vmem:[%s149 + $0x48] sm:$0xff] %v634
        %651 = vst [vmem:[%s149 + $0x50] sm:$0xff] %v635
        %652 = vst [vmem:[%s149 + $0x58] sm:$0xff] %v636
        %653 = vst [vmem:[%s149 + $0x60] sm:$0xff] %v637
        %654 = vst [vmem:[%s149 + $0x68] sm:$0xff] %v638
        %655 = vst [vmem:[%s149 + $0x70] sm:$0xff] %v639
        %656 = vst [vmem:[%s149 + $0x78] sm:$0xff] %v640
        %s657 = sand.u32 %s71, 1
        %s658 = scalar_lea.sflag [#allocation3], %s657
        %s659 = sand.u32 %s71, 1
        %s660 = smul.addr %s659, 128
        %s661 = scalar_lea.vmem [#allocation2], %s660
        // Predicated region
        $region29: #{tpu_custom_call.1} parent=27 // pred_check
          %p662 = pneg %p81
        $region30: #{tpu_custom_call.1} parent=27 // pred_check_branch
          %664 = sbr.rel (%p662) target = $region32
        $region31: #{tpu_custom_call.1} parent=27 // pred_region
          %s665 = smul.u32 16, %s16
          %s666 = ssub.s32 38, %s665
          %p667 = scmp.lt.s32.totalorder %s666, 16
          %s668 = scalar_select %p667, %s666, 16
          %s669 = smul.u32 128, %s668
          %s671 = ssub.s32 2048, %s669
          %672 = vsyncadd %s658, %s671
          %p673 = scmp.ne.s32.totalorder 0, %s669
          %s674 = smul.addr %s665, 128
          %s675 = scalar_lea.hbm %s2, %s674
          %s676 = smul.u32 8, %s668
          %s677 = sshll.u32 %s661, 4
          %s678 = int_to_ptr.vmem [resolvable:$true] %s677
          %s679 = sshll.u32 %s676, 4
          %683 = dma.vmem_to_hbm [thread:$0]  (%p673), %s678, %s679, %s675, %s658, 128, 128, 8
        $region32: #{tpu_custom_call.1} parent=27 // pred_fallthru
          _
      $region28: #{tpu_custom_call.1} parent=5 // pred_fallthru
        _
      %p684 = scmp.le.s32.totalorder 2, %s11
      // Predicated region
      $region33: #{tpu_custom_call.1} parent=5 // pred_check
        %p685 = pneg %p684
      $region34: #{tpu_custom_call.1} parent=5 // pred_check_branch
        %687 = sbr.rel (%p685) target = $region36
      $region35: #{tpu_custom_call.1} parent=5 // pred_region
        %s688 = ssub.s32 %s11, 2
        // Predicated region
        $region37: #{tpu_custom_call.1} parent=35 // pred_check
          %p689 = pneg %p87
        $region38: #{tpu_custom_call.1} parent=35 // pred_check_branch
          %691 = sbr.rel (%p689) target = $region40
        $region39: #{tpu_custom_call.1} parent=35 // pred_region
          %s692 = sand.u32 %s72, 1
          %s693 = scalar_lea.sflag [#allocation3], %s692
          %s694 = sand.u32 %s72, 1
          %s695 = smul.addr %s694, 128
          %s696 = scalar_lea.vmem [#allocation2], %s695
          %697 = dma.done %s693, 2048
        $region40: #{tpu_custom_call.1} parent=35 // pred_fallthru
          _
      $region36: #{tpu_custom_call.1} parent=5 // pred_fallthru
        _
    $region6: #{tpu_custom_call.1} parent=1 // loop_footer
      %s15 = sadd.s32 1, %s11
    $region7: #{tpu_custom_call.1} parent=1 // loop_footer_branch
      %10 = sbr.rel target = $region3
    $region8: #{tpu_custom_call.1} parent=1 // loop_exit
      _
    %698 = vsyncpa [#allocation3], 1
    %s699 = scalar_lea.sflag [#allocation3], 1
    %700 = vsyncpa %s699, 1

</llo_original>
